<compile_context>
chip_gen: v5e
topology: v5e:2x2
jax: 0.10.0
libtpu: 0.0.40
codegen_flags: <defaults>
</compile_context>

<pallas_src>
import functools

import jax
import jax.numpy as jnp
import numpy as np
from jax.experimental import pallas as pl
from jax.experimental.pallas import tpu as pltpu

_VMEM_LIMIT = 32 * 1024 * 1024          # safe scoped-VMEM request on v5e/v6e/v7x
_SUM_BLOCK_BYTES = 2 * 1024 * 1024      # pass-A layer_in block target
_MUL_BLOCK_BYTES = 4 * 1024 * 1024      # pass-C layer_out block target


# ---------------------------------------------------------------------------
# Pass A: lane-dense channel sum    chan_sum[n, 0, :] = sum_c layer_in[n, c, :]
# ---------------------------------------------------------------------------
def _chan_sum_kernel(x_ref, o_ref):
    # x_ref: (1, t_cin, H*W) lane-dense chunk;  o_ref: (1, 1, H*W) resident accumulator.
    c = pl.program_id(1)

    @pl.when(c == 0)
    def _():
        o_ref[...] = jnp.zeros_like(o_ref)

    o_ref[...] += jnp.sum(x_ref[...].astype(jnp.float32), axis=1, keepdims=True)


# ---------------------------------------------------------------------------
# Pass B: separable zero-padded/strided box filter via two small MXU matmuls
#         scale = (Ah_scaled @ mean_hw) @ Aw^T     (1/(Cin*kh*kw) folded into Ah)
# ---------------------------------------------------------------------------
def _boxfilter_kernel(m_ref, ah_ref, awt_ref, s_ref):
    # m_ref: (1, H, W), ah_ref: (Ho, H) scaled, awt_ref: (W, Wo), s_ref: (1, Ho, Wo)
    t = jnp.dot(ah_ref[...], m_ref[0], preferred_element_type=jnp.float32)    # (Ho, W)
    s_ref[...] = jnp.dot(t, awt_ref[...], preferred_element_type=jnp.float32)[None]


# ---------------------------------------------------------------------------
# Pass C: lane-dense broadcast multiply    out = layer_out * scale   (in place)
# ---------------------------------------------------------------------------
def _mul_kernel(x_ref, s_ref, o_ref):
    # x_ref: (1, t_cout, td), s_ref: (1, 1, td) -> sublane broadcast over channels.
    # Multiply in the payload dtype (f32 stays f32; bf16 stays packed on v6e/v7x).
    o_ref[...] = x_ref[...] * s_ref[...].astype(x_ref.dtype)


# ---------------------------------------------------------------------------
# Host-side helpers
# ---------------------------------------------------------------------------
def _window_matrix(in_size, k, stride, pad, out_size):
    """A[i, r] = 1 iff input position r is inside output window i of a zero-padded conv."""
    a = np.zeros((out_size, in_size), dtype=np.float32)
    for i in range(out_size):
        for d in range(k):
            r = i * stride + d - pad
            if 0 <= r < in_size:
                a[i, r] = 1.0
    return a


def _pair(v):
    if isinstance(v, (tuple, list)):
        return int(v[0]), int(v[1])
    return int(v), int(v)


def _pick_cin_chunk(cin, d, itemsize, budget=_SUM_BLOCK_BYTES):
    """Cin chunk (a divisor of Cin; multiple of 8 or == Cin) targeting ~budget bytes/block."""
    max_c = max(1, budget // max(1, d * itemsize))
    if cin <= max_c:
        return cin
    best = None
    for t in range(8, min(cin, max_c) + 1, 8):
        if cin % t == 0:
            best = t
    return best if best is not None else cin


def _pick_mul_tiles(cout, d, itemsize, budget=_MUL_BLOCK_BYTES):
    """(t_cout, td) block dims for the multiply, respecting the (8, 128)/full-dim rule."""
    sub = max(8, 32 // itemsize)                       # 8 (f32) / 16 (bf16) / 32 (int8) sublanes
    if d % 128 == 0 and cout * 128 * itemsize <= budget:
        td = min(d, max(128, (budget // (cout * itemsize)) // 128 * 128))
        return cout, td
    # d not a lane multiple (or Cout huge): keep the full lane-dense width and tile Cout.
    t_cout = min(cout, max(sub, (budget // max(1, d * itemsize)) // sub * sub))
    return t_cout, d


# ---------------------------------------------------------------------------
# Forward
# ---------------------------------------------------------------------------
@functools.partial(jax.jit, static_argnames=("kernel_size", "stride", "padding"),
                   donate_argnums=(0,))
def xnor_scale_binarizer(layer_out, layer_in, *, kernel_size, stride=1, padding=0):
    n, cin, h, w = layer_in.shape
    n2, cout, ho, wo = layer_out.shape
    kh, kw = _pair(kernel_size)
    sh, sw = _pair(stride)
    ph, pw = _pair(padding)
    assert n == n2
    assert ho == (h + 2 * ph - kh) // sh + 1
    assert wo == (w + 2 * pw - kw) // sw + 1

    in_itemsize = jnp.dtype(layer_in.dtype).itemsize
    out_itemsize = jnp.dtype(layer_out.dtype).itemsize

    # 1/(Cin*kh*kw) folded into the row window matrix (channel mean * fixed_weight value).
    ah = jnp.asarray(_window_matrix(h, kh, sh, ph, ho) / float(cin * kh * kw),
                     dtype=jnp.float32)                                      # (Ho, H)
    awt = jnp.asarray(_window_matrix(w, kw, sw, pw, wo).T, dtype=jnp.float32)  # (W, Wo)

    # ---- pass A: lane-dense channel sum, Cin tiled into the grid ----
    d_in = h * w
    x_in3 = layer_in.reshape(n, cin, d_in)                  # metadata-only (contiguous NCHW)
    t_cin = _pick_cin_chunk(cin, d_in, in_itemsize)
    n_cchunks = cin // t_cin

    chan_sum = pl.pallas_call(
        _chan_sum_kernel,
        out_shape=jax.ShapeDtypeStruct((n, 1, d_in), jnp.float32),
        grid_spec=pltpu.PrefetchScalarGridSpec(
            num_scalar_prefetch=0,
            grid=(n, n_cchunks),
            in_specs=[pl.BlockSpec((1, t_cin, d_in), lambda i, c: (i, c, 0))],
            out_specs=pl.BlockSpec((1, 1, d_in), lambda i, c: (i, 0, 0)),
        ),
        compiler_params=pltpu.CompilerParams(
            dimension_semantics=("parallel", "arbitrary"),
            vmem_limit_bytes=_VMEM_LIMIT),
        cost_estimate=pl.CostEstimate(
            flops=n * cin * d_in,
            transcendentals=0,
            bytes_accessed=in_itemsize * n * cin * d_in + 4 * n * d_in),
    )(x_in3)

    # ---- pass B: tiny separable box filter on the (H, W) channel sum ----
    mean_hw = chan_sum.reshape(n, h, w)                     # metadata-only
    scale = pl.pallas_call(
        _boxfilter_kernel,
        out_shape=jax.ShapeDtypeStruct((n, ho, wo), jnp.float32),
        grid_spec=pltpu.PrefetchScalarGridSpec(
            num_scalar_prefetch=0,
            grid=(n,),
            in_specs=[pl.BlockSpec((1, h, w), lambda i: (i, 0, 0)),
                      pl.BlockSpec((ho, h), lambda i: (0, 0)),
                      pl.BlockSpec((w, wo), lambda i: (0, 0))],
            out_specs=pl.BlockSpec((1, ho, wo), lambda i: (i, 0, 0)),
        ),
        compiler_params=pltpu.CompilerParams(dimension_semantics=("parallel",)),
    )(mean_hw, ah, awt)

    # ---- pass C: lane-dense in-place multiply over layer_out ----
    d = ho * wo
    x2 = layer_out.reshape(n, cout, d)                      # metadata-only
    s2 = scale.reshape(n, 1, d)                             # metadata-only
    t_cout, td = _pick_mul_tiles(cout, d, out_itemsize)
    grid = (n, pl.cdiv(cout, t_cout), pl.cdiv(d, td))

    out2 = pl.pallas_call(
        _mul_kernel,
        out_shape=jax.ShapeDtypeStruct((n, cout, d), layer_out.dtype),
        grid_spec=pltpu.PrefetchScalarGridSpec(
            num_scalar_prefetch=0,
            grid=grid,
            in_specs=[pl.BlockSpec((1, t_cout, td), lambda i, j, k: (i, j, k)),
                      pl.BlockSpec((1, 1, td), lambda i, j, k: (i, 0, k))],
            out_specs=pl.BlockSpec((1, t_cout, td), lambda i, j, k: (i, j, k)),
        ),
        compiler_params=pltpu.CompilerParams(
            dimension_semantics=("parallel", "parallel", "parallel"),
            vmem_limit_bytes=_VMEM_LIMIT),
        input_output_aliases={0: 0},     # out is layer_out rescaled in place (module's mul_)
        cost_estimate=pl.CostEstimate(
            flops=n * cout * d,
            transcendentals=0,
            bytes_accessed=2 * out_itemsize * n * cout * d + 4 * n * d),
    )(x2, s2)
    return out2.reshape(n, cout, ho, wo)


if __name__ == "__main__":
    key = jax.random.PRNGKey(0)
    k_in, k_out = jax.random.split(key)

    # Shapes consistent with XNORScaleBinarizer wrapping Conv2d(4, 8, 3, stride=1, padding=1)
    N, CIN, H, W = 2, 4, 16, 16
    COUT = 8
    KH = KW = 3
    SH = SW = 1
    PH = PW = 1
    HO = (H + 2 * PH - KH) // SH + 1
    WO = (W + 2 * PW - KW) // SW + 1

    layer_in = jax.random.normal(k_in, (N, CIN, H, W), dtype=jnp.float32)
    layer_out = jax.random.normal(k_out, (N, COUT, HO, WO), dtype=jnp.float32)

    # Snapshot to numpy BEFORE the call: layer_out is donated (the module mutates it in place).
    x_in = np.asarray(layer_in, dtype=np.float64)
    x_out = np.asarray(layer_out, dtype=np.float64)

    y = xnor_scale_binarizer(layer_out, layer_in,
                             kernel_size=(KH, KW), stride=(SH, SW), padding=(PH, PW))
    y = jax.block_until_ready(y)

    # ---- numpy reference (intended semantics of the PyTorch module) ----
    m = x_in.mean(axis=1)                                   # (N, H, W) channel mean
    mp = np.pad(m, ((0, 0), (PH, PH), (PW, PW)))
    scale_ref = np.zeros((N, HO, WO))
    for i in range(HO):
        for j in range(WO):
            win = mp[:, i * SH:i * SH + KH, j * SW:j * SW + KW]
            scale_ref[:, i, j] = win.sum(axis=(1, 2)) / (KH * KW)
    ref = x_out * scale_ref[:, None, :, :]

    assert y.shape == (N, COUT, HO, WO), y.shape
    assert y.dtype == jnp.float32, y.dtype
    max_err = float(np.max(np.abs(np.asarray(y, dtype=np.float64) - ref)))
    assert max_err < 2e-2, f"max abs err {max_err}"
    print("KERNEL_OK")
</pallas_src>

<mosaic_0001>
module attributes {stable_mosaic.version = 11 : i64} {
  func.func @_chan_sum_kernel(%arg0: i32, %arg1: i32, %arg2: memref<1x4x256xf32, #tpu.memory_space<vmem>>, %arg3: memref<1x1x256xf32, #tpu.memory_space<vmem>>) attributes {dimension_semantics = [#tpu.dimension_semantics<parallel>, #tpu.dimension_semantics<arbitrary>], iteration_bounds = array<i64: 2, 1>, scalar_prefetch = 0 : i64, scratch_operands = 0 : i64, tpu.core_type = #tpu.core_type<tc>, window_params = [{transform_indices = @transform_0, window_bounds = array<i64: 1, 4, 256>}, {transform_indices = @transform_1, window_bounds = array<i64: 1, 1, 256>}]} {
    %c0_i32 = arith.constant 0 : i32
    %0 = arith.cmpi eq, %arg1, %c0_i32 : i32
    %1 = arith.extui %0 : i1 to i32
    %c0_i32_0 = arith.constant 0 : i32
    %2 = arith.cmpi ne, %1, %c0_i32_0 : i32
    scf.if %2 {
      %cst_9 = arith.constant 0.000000e+00 : f32
      %9 = vector.broadcast %cst_9 : f32 to vector<1x1x256xf32>
      %c0_10 = arith.constant 0 : index
      %c0_11 = arith.constant 0 : index
      %c0_12 = arith.constant 0 : index
      %10 = vector.load %arg3[%c0_10, %c0_11, %c0_12] : memref<1x1x256xf32, #tpu.memory_space<vmem>>, vector<1x1x256xf32>
      tpu.vector_store %arg3[%c0_10, %c0_11, %c0_12], %9 {strides = array<i32>} : memref<1x1x256xf32, #tpu.memory_space<vmem>>, vector<1x1x256xf32>,
    } else {
    }
    %c0 = arith.constant 0 : index
    %c0_1 = arith.constant 0 : index
    %c0_2 = arith.constant 0 : index
    %3 = vector.load %arg3[%c0, %c0_1, %c0_2] : memref<1x1x256xf32, #tpu.memory_space<vmem>>, vector<1x1x256xf32>
    %c0_3 = arith.constant 0 : index
    %c0_4 = arith.constant 0 : index
    %c0_5 = arith.constant 0 : index
    %4 = vector.load %arg2[%c0_3, %c0_4, %c0_5] : memref<1x4x256xf32, #tpu.memory_space<vmem>>, vector<1x4x256xf32>
    %cst = arith.constant dense<0.000000e+00> : vector<1x256xf32>
    %5 = vector.multi_reduction <add>, %4, %cst [1] : vector<1x4x256xf32> to vector<1x256xf32>
    %6 = vector.shape_cast %5 : vector<1x256xf32> to vector<1x1x256xf32>
    %7 = arith.addf %3, %6 : vector<1x1x256xf32>
    %c0_6 = arith.constant 0 : index
    %c0_7 = arith.constant 0 : index
    %c0_8 = arith.constant 0 : index
    %8 = vector.load %arg3[%c0_6, %c0_7, %c0_8] : memref<1x1x256xf32, #tpu.memory_space<vmem>>, vector<1x1x256xf32>
    tpu.vector_store %arg3[%c0_6, %c0_7, %c0_8], %7 {strides = array<i32>} : memref<1x1x256xf32, #tpu.memory_space<vmem>>, vector<1x1x256xf32>,
    return
  }
  func.func @transform_0(%arg0: i32, %arg1: i32) -> (i32, i32, i32) {
    %c0_i32 = arith.constant 0 : i32
    %c0_i32_0 = arith.constant 0 : i32
    return %arg0, %arg1, %c0_i32 : i32, i32, i32
  }
  func.func @transform_1(%arg0: i32, %arg1: i32) -> (i32, i32, i32) {
    %c0_i32 = arith.constant 0 : i32
    %c0_i32_0 = arith.constant 0 : i32
    %c0_i32_1 = arith.constant 0 : i32
    return %arg0, %c0_i32, %c0_i32_0 : i32, i32, i32
  }
}

module attributes {stable_mosaic.version = 11 : i64} {
  func.func @_mul_kernel(%arg0: i32, %arg1: i32, %arg2: i32, %arg3: memref<1x8x256xf32, #tpu.memory_space<vmem>>, %arg4: memref<1x1x256xf32, #tpu.memory_space<vmem>>, %arg5: memref<1x8x256xf32, #tpu.memory_space<vmem>>) attributes {dimension_semantics = [#tpu.dimension_semantics<parallel>, #tpu.dimension_semantics<parallel>, #tpu.dimension_semantics<parallel>], iteration_bounds = array<i64: 2, 1, 1>, scalar_prefetch = 0 : i64, scratch_operands = 0 : i64, tpu.core_type = #tpu.core_type<tc>, window_params = [{transform_indices = @transform_0, window_bounds = array<i64: 1, 8, 256>}, {transform_indices = @transform_1, window_bounds = array<i64: 1, 1, 256>}, {transform_indices = @transform_2, window_bounds = array<i64: 1, 8, 256>}]} {
    %c0 = arith.constant 0 : index
    %c0_0 = arith.constant 0 : index
    %c0_1 = arith.constant 0 : index
    %0 = vector.load %arg3[%c0, %c0_0, %c0_1] : memref<1x8x256xf32, #tpu.memory_space<vmem>>, vector<1x8x256xf32>
    %c0_2 = arith.constant 0 : index
    %c0_3 = arith.constant 0 : index
    %c0_4 = arith.constant 0 : index
    %1 = vector.load %arg4[%c0_2, %c0_3, %c0_4] : memref<1x1x256xf32, #tpu.memory_space<vmem>>, vector<1x1x256xf32>
    %2 = vector.broadcast %1 : vector<1x1x256xf32> to vector<1x8x256xf32>
    %3 = arith.mulf %0, %2 : vector<1x8x256xf32>
    %c0_5 = arith.constant 0 : index
    %c0_6 = arith.constant 0 : index
    %c0_7 = arith.constant 0 : index
    %4 = vector.load %arg5[%c0_5, %c0_6, %c0_7] : memref<1x8x256xf32, #tpu.memory_space<vmem>>, vector<1x8x256xf32>
    tpu.vector_store %arg5[%c0_5, %c0_6, %c0_7], %3 {strides = array<i32>} : memref<1x8x256xf32, #tpu.memory_space<vmem>>, vector<1x8x256xf32>,
    return
  }
  func.func @transform_0(%arg0: i32, %arg1: i32, %arg2: i32) -> (i32, i32, i32) {
    %c0_i32 = arith.constant 0 : i32
    return %arg0, %arg1, %arg2 : i32, i32, i32
  }
  func.func @transform_1(%arg0: i32, %arg1: i32, %arg2: i32) -> (i32, i32, i32) {
    %c0_i32 = arith.constant 0 : i32
    %c0_i32_0 = arith.constant 0 : i32
    return %arg0, %c0_i32, %arg2 : i32, i32, i32
  }
  func.func @transform_2(%arg0: i32, %arg1: i32, %arg2: i32) -> (i32, i32, i32) {
    %c0_i32 = arith.constant 0 : i32
    return %arg0, %arg1, %arg2 : i32, i32, i32
  }
}

module attributes {stable_mosaic.version = 11 : i64} {
  func.func @_boxfilter_kernel(%arg0: i32, %arg1: memref<1x16x16xf32, #tpu.memory_space<vmem>>, %arg2: memref<16x16xf32, #tpu.memory_space<vmem>>, %arg3: memref<16x16xf32, #tpu.memory_space<vmem>>, %arg4: memref<1x16x16xf32, #tpu.memory_space<vmem>>) attributes {dimension_semantics = [#tpu.dimension_semantics<parallel>], iteration_bounds = array<i64: 2>, scalar_prefetch = 0 : i64, scratch_operands = 0 : i64, tpu.core_type = #tpu.core_type<tc>, window_params = [{transform_indices = @transform_0, window_bounds = array<i64: 1, 16, 16>}, {pipeline_mode = #tpu.pipeline_mode<synchronous>, transform_indices = @transform_1, window_bounds = array<i64: 16, 16>}, {pipeline_mode = #tpu.pipeline_mode<synchronous>, transform_indices = @transform_2, window_bounds = array<i64: 16, 16>}, {transform_indices = @transform_3, window_bounds = array<i64: 1, 16, 16>}]} {
    %c0 = arith.constant 0 : index
    %c0_0 = arith.constant 0 : index
    %0 = vector.load %arg2[%c0, %c0_0] : memref<16x16xf32, #tpu.memory_space<vmem>>, vector<16x16xf32>
    %c0_1 = arith.constant 0 : index
    %c0_2 = arith.constant 0 : index
    %c0_3 = arith.constant 0 : index
    %1 = vector.load %arg1[%c0_1, %c0_2, %c0_3] : memref<1x16x16xf32, #tpu.memory_space<vmem>>, vector<1x16x16xf32>
    %2 = vector.shape_cast %1 : vector<1x16x16xf32> to vector<16x16xf32>
    %cst = arith.constant dense<0.000000e+00> : vector<16x16xf32>
    %3 = tpu.matmul %0, %2, %cst {dimension_numbers = #tpu.dot_dimension_numbers<[1], [0], [0], [1], [0, 0, 1, 1], [], []>} : vector<16x16xf32>, vector<16x16xf32>, vector<16x16xf32> -> vector<16x16xf32>
    %c0_4 = arith.constant 0 : index
    %c0_5 = arith.constant 0 : index
    %4 = vector.load %arg3[%c0_4, %c0_5] : memref<16x16xf32, #tpu.memory_space<vmem>>, vector<16x16xf32>
    %cst_6 = arith.constant dense<0.000000e+00> : vector<16x16xf32>
    %5 = tpu.matmul %3, %4, %cst_6 {dimension_numbers = #tpu.dot_dimension_numbers<[1], [0], [0], [1], [0, 0, 1, 1], [], []>} : vector<16x16xf32>, vector<16x16xf32>, vector<16x16xf32> -> vector<16x16xf32>
    %6 = vector.shape_cast %5 : vector<16x16xf32> to vector<1x16x16xf32>
    %c0_7 = arith.constant 0 : index
    %c0_8 = arith.constant 0 : index
    %c0_9 = arith.constant 0 : index
    %7 = vector.load %arg4[%c0_7, %c0_8, %c0_9] : memref<1x16x16xf32, #tpu.memory_space<vmem>>, vector<1x16x16xf32>
    tpu.vector_store %arg4[%c0_7, %c0_8, %c0_9], %6 {strides = array<i32>} : memref<1x16x16xf32, #tpu.memory_space<vmem>>, vector<1x16x16xf32>,
    return
  }
  func.func @transform_0(%arg0: i32) -> (i32, i32, i32) {
    %c0_i32 = arith.constant 0 : i32
    %c0_i32_0 = arith.constant 0 : i32
    %c0_i32_1 = arith.constant 0 : i32
    return %arg0, %c0_i32, %c0_i32_0 : i32, i32, i32
  }
  func.func @transform_1(%arg0: i32) -> (i32, i32) {
    %c0_i32 = arith.constant 0 : i32
    %c0_i32_0 = arith.constant 0 : i32
    %c0_i32_1 = arith.constant 0 : i32
    return %c0_i32, %c0_i32_0 : i32, i32
  }
  func.func @transform_2(%arg0: i32) -> (i32, i32) {
    %c0_i32 = arith.constant 0 : i32
    %c0_i32_0 = arith.constant 0 : i32
    %c0_i32_1 = arith.constant 0 : i32
    return %c0_i32, %c0_i32_0 : i32, i32
  }
  func.func @transform_3(%arg0: i32) -> (i32, i32, i32) {
    %c0_i32 = arith.constant 0 : i32
    %c0_i32_0 = arith.constant 0 : i32
    %c0_i32_1 = arith.constant 0 : i32
    return %arg0, %c0_i32, %c0_i32_0 : i32, i32, i32
  }
}

</mosaic_0001>

<llo_original>
// kernel: xnor_scale_binarizer.4
$region0: #{xnor_scale_binarizer.4}
  #allocation0 [shape = 'u32[]', space=smem, size = 0x4, offset = 0x4, fixed_abs, tag = 'smem constant byte address 0x4 - core index']
  #allocation1 [shape = 'u32[72,128]{1,0:T(1,128)}', space=vmem, size = 0x9000, scoped, tag = 'internal scratch']
  %s0 = inlined_call_operand.vmem [shape: f32[2,16,16], index: 0, kind: input, shape index: {}]
  %s1 = inlined_call_operand.vmem [shape: f32[16,16], index: 1, kind: input, shape index: {}]
  %s2 = inlined_call_operand.vmem [shape: f32[16,16], index: 2, kind: input, shape index: {}]
  %s3 = inlined_call_operand.vmem [shape: f32[2,16,16], index: 3, kind: output, shape index: {}]
  %s4 = sld [smem:[#allocation0]]
  $region45: #{xnor_scale_binarizer.4} parent=0
    _
  %s6 = ssub.s32 1, %s4
  %s7 = scalar_select 0, %s6, %s4
  loop: start=0, step=1, limit=4
  $region2: #{xnor_scale_binarizer.4} parent=0 // loop_pre_header
    _
  $region3: #{xnor_scale_binarizer.4} parent=0 // loop_header
    %s9 = sphi 0, %s13
    %p10 = scmp.ge.s32.totalorder %s9, 4
    %s19 = sphi 0, %s21
    %s22 = sphi 0, %s19
    %s23 = sphi 0, %s22
    %s39 = sphi 0, %s23
    %s43 = sphi 0, %s43
    %s45 = sphi 0, %s43
    %s46 = sphi 0, %s45
    %s60 = sphi 0, %s46
    %s64 = sphi 0, %s64
    %s66 = sphi 0, %s64
    %s67 = sphi 0, %s66
    %s81 = sphi 0, %s67
    %s87 = sphi 0, %s89
    %s90 = sphi 0, %s87
    %s91 = sphi 0, %s90
    %s107 = sphi 0, %s91
  $region4: #{xnor_scale_binarizer.4} parent=0 // loop_header_branch
    %12 = sbr.rel (%p10) target = $region8
  $region5: #{xnor_scale_binarizer.4} parent=0 // loop_body
    %s14 = ssub.s32 %s9, 1
    %s15 = ssub.s32 %s9, 2
    %s16 = sadd.s32 %s9, 1
    %s17 = ssub.s32 %s9, %s16
    %p18 = scmp.eq.s32.totalorder %s17, 0
    %s20 = sadd.s32 %s19, 1
    %s21 = scalar_select %p18, %s19, %s20
    %p24 = pneg %p18
    %p25 = scmp.eq.s32.totalorder %s9, 1
    %p26 = por %p24, %p25
    %p27 = scmp.ne.s32.totalorder %s19, %s22
    %p28 = scmp.eq.s32.totalorder %s9, 0
    %p29 = por %p27, %p28
    %p30 = scmp.ne.s32.totalorder %s19, %s22
    %p31 = scmp.eq.s32.totalorder %s14, 1
    %p32 = por %p30, %p31
    %p33 = scmp.ne.s32.totalorder %s22, %s23
    %p34 = scmp.eq.s32.totalorder %s14, 0
    %p35 = por %p33, %p34
    %p36 = scmp.ne.s32.totalorder %s22, %s23
    %p37 = scmp.eq.s32.totalorder %s15, 1
    %p38 = por %p36, %p37
    %p40 = scmp.ne.s32.totalorder %s23, %s39
    %p41 = scmp.eq.s32.totalorder %s15, 0
    %p42 = por %p40, %p41
    %s44 = sadd.s32 %s43, 1
    %p47 = scmp.eq.s32.totalorder %s9, 1
    %p48 = scmp.ne.s32.totalorder %s43, %s45
    %p49 = scmp.eq.s32.totalorder %s9, 0
    %p50 = por %p48, %p49
    %p51 = scmp.ne.s32.totalorder %s43, %s45
    %p52 = scmp.eq.s32.totalorder %s14, 1
    %p53 = por %p51, %p52
    %p54 = scmp.ne.s32.totalorder %s45, %s46
    %p55 = scmp.eq.s32.totalorder %s14, 0
    %p56 = por %p54, %p55
    %p57 = scmp.ne.s32.totalorder %s45, %s46
    %p58 = scmp.eq.s32.totalorder %s15, 1
    %p59 = por %p57, %p58
    %p61 = scmp.ne.s32.totalorder %s46, %s60
    %p62 = scmp.eq.s32.totalorder %s15, 0
    %p63 = por %p61, %p62
    %s65 = sadd.s32 %s64, 1
    %p68 = scmp.eq.s32.totalorder %s9, 1
    %p69 = scmp.ne.s32.totalorder %s64, %s66
    %p70 = scmp.eq.s32.totalorder %s9, 0
    %p71 = por %p69, %p70
    %p72 = scmp.ne.s32.totalorder %s64, %s66
    %p73 = scmp.eq.s32.totalorder %s14, 1
    %p74 = por %p72, %p73
    %p75 = scmp.ne.s32.totalorder %s66, %s67
    %p76 = scmp.eq.s32.totalorder %s14, 0
    %p77 = por %p75, %p76
    %p78 = scmp.ne.s32.totalorder %s66, %s67
    %p79 = scmp.eq.s32.totalorder %s15, 1
    %p80 = por %p78, %p79
    %p82 = scmp.ne.s32.totalorder %s67, %s81
    %p83 = scmp.eq.s32.totalorder %s15, 0
    %p84 = por %p82, %p83
    %s85 = ssub.s32 %s9, %s16
    %p86 = scmp.eq.s32.totalorder %s85, 0
    %s88 = sadd.s32 %s87, 1
    %s89 = scalar_select %p86, %s87, %s88
    %p92 = pneg %p86
    %p93 = scmp.eq.s32.totalorder %s9, 1
    %p94 = por %p92, %p93
    %p95 = scmp.ne.s32.totalorder %s87, %s90
    %p96 = scmp.eq.s32.totalorder %s9, 0
    %p97 = por %p95, %p96
    %p98 = scmp.ne.s32.totalorder %s87, %s90
    %p99 = scmp.eq.s32.totalorder %s14, 1
    %p100 = por %p98, %p99
    %p101 = scmp.ne.s32.totalorder %s90, %s91
    %p102 = scmp.eq.s32.totalorder %s14, 0
    %p103 = por %p101, %p102
    %p104 = scmp.ne.s32.totalorder %s90, %s91
    %p105 = scmp.eq.s32.totalorder %s15, 1
    %p106 = por %p104, %p105
    %p108 = scmp.ne.s32.totalorder %s91, %s107
    %p109 = scmp.eq.s32.totalorder %s15, 0
    %p110 = por %p108, %p109
    %p111 = scmp.le.s32.totalorder 1, %s9
    %p112 = scmp.lt.s32.totalorder %s9, 3
    %p113 = pnand %p111, %p112
    %p114 = pneg %p113
    // Predicated region
    $region9: #{xnor_scale_binarizer.4} parent=5 // pred_check
      _
    $region10: #{xnor_scale_binarizer.4} parent=5 // pred_check_branch
      %116 = sbr.rel (%p113) target = $region12
    $region11: #{xnor_scale_binarizer.4} parent=5 // pred_region
      %s117 = ssub.s32 %s9, 1
      // Predicated region
      $region13: #{xnor_scale_binarizer.4} parent=11 // pred_check
        %p118 = pneg %p56
      $region14: #{xnor_scale_binarizer.4} parent=11 // pred_check_branch
        %120 = sbr.rel (%p118) target = $region16
      $region15: #{xnor_scale_binarizer.4} parent=11 // pred_region
        _
      $region16: #{xnor_scale_binarizer.4} parent=11 // pred_fallthru
        _
      // Predicated region
      $region17: #{xnor_scale_binarizer.4} parent=11 // pred_check
        %p121 = pneg %p77
      $region18: #{xnor_scale_binarizer.4} parent=11 // pred_check_branch
        %123 = sbr.rel (%p121) target = $region20
      $region19: #{xnor_scale_binarizer.4} parent=11 // pred_region
        _
      $region20: #{xnor_scale_binarizer.4} parent=11 // pred_fallthru
        _
    $region12: #{xnor_scale_binarizer.4} parent=5 // pred_fallthru
      _
    %p124 = scmp.lt.s32.totalorder %s9, 2
    // Predicated region
    $region21: #{xnor_scale_binarizer.4} parent=5 // pred_check
      %p125 = pneg %p124
    $region22: #{xnor_scale_binarizer.4} parent=5 // pred_check_branch
      %127 = sbr.rel (%p125) target = $region24
    $region23: #{xnor_scale_binarizer.4} parent=5 // pred_region
      // Predicated region
      $region25: #{xnor_scale_binarizer.4} parent=23 // pred_check
        %p128 = pneg %p29
      $region26: #{xnor_scale_binarizer.4} parent=23 // pred_check_branch
        %130 = sbr.rel (%p128) target = $region28
      $region27: #{xnor_scale_binarizer.4} parent=23 // pred_region
        %p131 = scmp.lt.s32.totalorder %s9, 1
        %s132 = scalar_select %p131, %s9, 1
        %s133 = smul.addr %s132, 2
        %s134 = smul.addr %s133, 8
        %s135 = scalar_lea.vmem %s0, %s134
      $region28: #{xnor_scale_binarizer.4} parent=23 // pred_fallthru
        _
    $region24: #{xnor_scale_binarizer.4} parent=5 // pred_fallthru
      _
    %p136 = scmp.le.s32.totalorder 1, %s9
    %p137 = scmp.lt.s32.totalorder %s9, 3
    %p138 = pnand %p136, %p137
    %p139 = pneg %p138
    // Predicated region
    $region29: #{xnor_scale_binarizer.4} parent=5 // pred_check
      _
    $region30: #{xnor_scale_binarizer.4} parent=5 // pred_check_branch
      %141 = sbr.rel (%p138) target = $region32
    $region31: #{xnor_scale_binarizer.4} parent=5 // pred_region
      %s142 = ssub.s32 %s9, 1
      %p143 = scmp.lt.s32.totalorder %s14, 1
      %s144 = scalar_select %p143, %s14, 1
      %s145 = smul.addr %s144, 2
      %s146 = smul.addr %s145, 8
      %s147 = scalar_lea.vmem %s0, %s146
      %p148 = pneg %p35
      %p149 = pneg %p32
      %p150 = pneg %p56
      %p151 = pneg %p53
      %p152 = pneg %p77
      %p153 = pneg %p74
      %p154 = pneg %p103
      %p155 = pneg %p100
      %p156 = scmp.lt.s32.totalorder %s14, 1
      %s157 = scalar_select %p156, %s14, 1
      %s158 = smul.addr %s157, 2
      %s159 = smul.addr %s158, 8
      %s160 = scalar_lea.vmem %s3, %s159
      %p161 = scmp.lt.s32.totalorder %s14, 1
      %s162 = scalar_select %p161, %s14, 1
      %s163 = smul.addr %s162, 2
      %s164 = smul.addr %s163, 8
      %s165 = scalar_lea.vmem %s0, %s164
      %p166 = scmp.lt.s32.totalorder %s14, 1
      %s167 = scalar_select %p166, %s14, 1
      %s168 = smul.addr %s167, 2
      %s169 = smul.addr %s168, 8
      %s170 = scalar_lea.vmem %s3, %s169
      %v171 = vld [vmem:[%s1] sm:$0xff]
      %v172 = vld [vmem:[%s1 + $0x8] sm:$0xff]
      %v173 = vld [vmem:[%s165] sm:$0xff]
      %v174 = vld [vmem:[%s165 + $0x8] sm:$0xff]
      %vm175 = vcmask 130048
      %v177 = vsel %vm175, %v171, 0
      %v180 = vsel %vm175, %v172, 0
      %182 = vmatpush.msra.mxu0 0.0
      %183 = vmatpush.msra.mxu0 0.0
      %184 = vmatpush.msra.mxu0 0.0
      %185 = vmatpush.msra.mxu0 0.0
      %186 = vmatpush.msra.mxu0 0.0
      %187 = vmatpush.msra.mxu0 0.0
      %188 = vmatpush.msra.mxu0 0.0
      %189 = vmatpush.msra.mxu0 0.0
      %190 = vmatpush.msra.mxu0 0.0
      %191 = vmatpush.msra.mxu0 0.0
      %192 = vmatpush.msra.mxu0 0.0
      %193 = vmatpush.msra.mxu0 0.0
      %194 = vmatpush.msra.mxu0 0.0
      %195 = vmatpush.msra.mxu0 0.0
      %196 = vmatpush.msra.mxu0 %v174
      %197 = vmatpush.msra.mxu0 %v173
      %198 = vmatmul.f32.gmra.mxu0 %v177
      %v199 = vpop.f32.mrf.mxu0
      %v200 = vadd.f32 0.0, %v199
      %201 = vmatmul.f32.gmra.mxu0 %v180
      %v202 = vpop.f32.mrf.mxu0
      %v203 = vadd.f32 0.0, %v202
      %204 = vdwg.mxu0
      %v205 = vld [vmem:[%s2] sm:$0xff]
      %v206 = vld [vmem:[%s2 + $0x8] sm:$0xff]
      %v208 = vsel %vm175, %v200, 0
      %v211 = vsel %vm175, %v203, 0
      %213 = vmatpush.msra.mxu0 0.0
      %214 = vmatpush.msra.mxu0 0.0
      %215 = vmatpush.msra.mxu0 0.0
      %216 = vmatpush.msra.mxu0 0.0
      %217 = vmatpush.msra.mxu0 0.0
      %218 = vmatpush.msra.mxu0 0.0
      %219 = vmatpush.msra.mxu0 0.0
      %220 = vmatpush.msra.mxu0 0.0
      %221 = vmatpush.msra.mxu0 0.0
      %222 = vmatpush.msra.mxu0 0.0
      %223 = vmatpush.msra.mxu0 0.0
      %224 = vmatpush.msra.mxu0 0.0
      %225 = vmatpush.msra.mxu0 0.0
      %226 = vmatpush.msra.mxu0 0.0
      %227 = vmatpush.msra.mxu0 %v206
      %228 = vmatpush.msra.mxu0 %v205
      %229 = vmatmul.f32.gmra.mxu0 %v208
      %v230 = vpop.f32.mrf.mxu0
      %v231 = vadd.f32 0.0, %v230
      %232 = vmatmul.f32.gmra.mxu0 %v211
      %v233 = vpop.f32.mrf.mxu0
      %v234 = vadd.f32 0.0, %v233
      %235 = vdwg.mxu0
      %236 = vst.msk [vmem:[%s170] sm:$0xff] %vm175, %v231
      %237 = vst.msk [vmem:[%s170 + $0x8] sm:$0xff] %vm175, %v234
      %p238 = scmp.lt.s32.totalorder %s14, 1
      %s239 = scalar_select %p238, %s14, 1
      %s240 = smul.addr %s239, 2
      %s241 = smul.addr %s240, 8
      %s242 = scalar_lea.vmem %s3, %s241
      // Predicated region
      $region33: #{xnor_scale_binarizer.4} parent=31 // pred_check
        %p243 = pneg %p100
      $region34: #{xnor_scale_binarizer.4} parent=31 // pred_check_branch
        %245 = sbr.rel (%p243) target = $region36
      $region35: #{xnor_scale_binarizer.4} parent=31 // pred_region
        _
      $region36: #{xnor_scale_binarizer.4} parent=31 // pred_fallthru
        _
    $region32: #{xnor_scale_binarizer.4} parent=5 // pred_fallthru
      _
    %p246 = scmp.le.s32.totalorder 2, %s9
    // Predicated region
    $region37: #{xnor_scale_binarizer.4} parent=5 // pred_check
      %p247 = pneg %p246
    $region38: #{xnor_scale_binarizer.4} parent=5 // pred_check_branch
      %249 = sbr.rel (%p247) target = $region40
    $region39: #{xnor_scale_binarizer.4} parent=5 // pred_region
      %s250 = ssub.s32 %s9, 2
      // Predicated region
      $region41: #{xnor_scale_binarizer.4} parent=39 // pred_check
        %p251 = pneg %p106
      $region42: #{xnor_scale_binarizer.4} parent=39 // pred_check_branch
        %253 = sbr.rel (%p251) target = $region44
      $region43: #{xnor_scale_binarizer.4} parent=39 // pred_region
        %p254 = scmp.lt.s32.totalorder %s15, 1
        %s255 = scalar_select %p254, %s15, 1
        %s256 = smul.addr %s255, 2
        %s257 = smul.addr %s256, 8
        %s258 = scalar_lea.vmem %s3, %s257
      $region44: #{xnor_scale_binarizer.4} parent=39 // pred_fallthru
        _
    $region40: #{xnor_scale_binarizer.4} parent=5 // pred_fallthru
      _
  $region6: #{xnor_scale_binarizer.4} parent=0 // loop_footer
    %s13 = sadd.s32 1, %s9
  $region7: #{xnor_scale_binarizer.4} parent=0 // loop_footer_branch
    %8 = sbr.rel target = $region3
  $region8: #{xnor_scale_binarizer.4} parent=0 // loop_exit
    _

// kernel: xnor_scale_binarizer.3
$region0: #{xnor_scale_binarizer.3}
  #allocation0 [shape = 'u32[]', space=smem, size = 0x4, offset = 0x4, fixed_abs, tag = 'smem constant byte address 0x4 - core index']
  #allocation1 [shape = 'u32[72,128]{1,0:T(1,128)}', space=vmem, size = 0x9000, scoped, tag = 'internal scratch']
  %s0 = inlined_call_operand.vmem [shape: f32[2,4,256], index: 0, kind: input, shape index: {}]
  %s1 = inlined_call_operand.vmem [shape: f32[2,1,256], index: 1, kind: output, shape index: {}]
  %s2 = sld [smem:[#allocation0]]
  $region41: #{xnor_scale_binarizer.3} parent=0
    _
  %s4 = ssub.s32 1, %s2
  %s5 = scalar_select 0, %s4, %s2
  loop: start=0, step=1, limit=4
  $region2: #{xnor_scale_binarizer.3} parent=0 // loop_pre_header
    _
  $region3: #{xnor_scale_binarizer.3} parent=0 // loop_header
    %s7 = sphi 0, %s11
    %p8 = scmp.ge.s32.totalorder %s7, 4
    %s14 = sphi 0, %s26
    %s15 = sphi 0, %s22
    %s16 = sphi 0, %s14
    %s17 = sphi 0, %s15
    %s18 = sphi 0, %s16
    %s19 = sphi 0, %s17
    %s31 = sphi 0, %s33
    %s34 = sphi 0, %s31
    %s35 = sphi 0, %s34
    %s51 = sphi 0, %s35
    %s57 = sphi 0, %s59
    %s60 = sphi 0, %s57
    %s61 = sphi 0, %s60
    %s77 = sphi 0, %s61
  $region4: #{xnor_scale_binarizer.3} parent=0 // loop_header_branch
    %10 = sbr.rel (%p8) target = $region8
  $region5: #{xnor_scale_binarizer.3} parent=0 // loop_body
    %s12 = ssub.s32 %s7, 1
    %s13 = ssub.s32 %s7, 2
    %s20 = sadd.s32 1, %s15
    %p21 = scmp.ge.s32.totalorder %s20, 1
    %s22 = scalar_select %p21, 0, %s20
    %s23 = sadd.s32 1, %s14
    %s24 = scalar_select %p21, %s23, %s14
    %p25 = scmp.ge.s32.totalorder %s24, 2
    %s26 = scalar_select %p25, 0, %s24
    %s27 = ssub.s32 %s14, %s26
    %s28 = ssub.s32 %s15, %s22
    %s29 = sor.u32 %s27, %s28
    %p30 = scmp.eq.s32.totalorder %s29, 0
    %s32 = sadd.s32 %s31, 1
    %s33 = scalar_select %p30, %s31, %s32
    %p36 = pneg %p30
    %p37 = scmp.eq.s32.totalorder %s7, 1
    %p38 = por %p36, %p37
    %p39 = scmp.ne.s32.totalorder %s31, %s34
    %p40 = scmp.eq.s32.totalorder %s7, 0
    %p41 = por %p39, %p40
    %p42 = scmp.ne.s32.totalorder %s31, %s34
    %p43 = scmp.eq.s32.totalorder %s12, 1
    %p44 = por %p42, %p43
    %p45 = scmp.ne.s32.totalorder %s34, %s35
    %p46 = scmp.eq.s32.totalorder %s12, 0
    %p47 = por %p45, %p46
    %p48 = scmp.ne.s32.totalorder %s34, %s35
    %p49 = scmp.eq.s32.totalorder %s13, 1
    %p50 = por %p48, %p49
    %p52 = scmp.ne.s32.totalorder %s35, %s51
    %p53 = scmp.eq.s32.totalorder %s13, 0
    %p54 = por %p52, %p53
    %s55 = ssub.s32 %s14, %s26
    %p56 = scmp.eq.s32.totalorder %s55, 0
    %s58 = sadd.s32 %s57, 1
    %s59 = scalar_select %p56, %s57, %s58
    %p62 = pneg %p56
    %p63 = scmp.eq.s32.totalorder %s7, 1
    %p64 = por %p62, %p63
    %p65 = scmp.ne.s32.totalorder %s57, %s60
    %p66 = scmp.eq.s32.totalorder %s7, 0
    %p67 = por %p65, %p66
    %p68 = scmp.ne.s32.totalorder %s57, %s60
    %p69 = scmp.eq.s32.totalorder %s12, 1
    %p70 = por %p68, %p69
    %p71 = scmp.ne.s32.totalorder %s60, %s61
    %p72 = scmp.eq.s32.totalorder %s12, 0
    %p73 = por %p71, %p72
    %p74 = scmp.ne.s32.totalorder %s60, %s61
    %p75 = scmp.eq.s32.totalorder %s13, 1
    %p76 = por %p74, %p75
    %p78 = scmp.ne.s32.totalorder %s61, %s77
    %p79 = scmp.eq.s32.totalorder %s13, 0
    %p80 = por %p78, %p79
    %p81 = scmp.le.s32.totalorder 1, %s7
    %p82 = scmp.lt.s32.totalorder %s7, 3
    %p83 = pnand %p81, %p82
    %p84 = pneg %p83
    // Predicated region
    $region9: #{xnor_scale_binarizer.3} parent=5 // pred_check
      _
    $region10: #{xnor_scale_binarizer.3} parent=5 // pred_check_branch
      %86 = sbr.rel (%p83) target = $region12
    $region11: #{xnor_scale_binarizer.3} parent=5 // pred_region
      %s87 = ssub.s32 %s7, 1
    $region12: #{xnor_scale_binarizer.3} parent=5 // pred_fallthru
      _
    %p88 = scmp.lt.s32.totalorder %s7, 2
    // Predicated region
    $region13: #{xnor_scale_binarizer.3} parent=5 // pred_check
      %p89 = pneg %p88
    $region14: #{xnor_scale_binarizer.3} parent=5 // pred_check_branch
      %91 = sbr.rel (%p89) target = $region16
    $region15: #{xnor_scale_binarizer.3} parent=5 // pred_region
      // Predicated region
      $region17: #{xnor_scale_binarizer.3} parent=15 // pred_check
        %p92 = pneg %p41
      $region18: #{xnor_scale_binarizer.3} parent=15 // pred_check_branch
        %94 = sbr.rel (%p92) target = $region20
      $region19: #{xnor_scale_binarizer.3} parent=15 // pred_region
        %p95 = scmp.lt.s32.totalorder %s14, 1
        %s96 = scalar_select %p95, %s14, 1
        %p97 = scmp.lt.s32.totalorder %s15, 0
        %s98 = scalar_select %p97, %s15, 0
        %s99 = smul.addr %s98, 2
        %s100 = smul.addr %s96, 2
        %s101 = sadd.s32 %s99, %s100
        %s102 = smul.addr %s101, 4
        %s103 = scalar_lea.vmem %s0, %s102
      $region20: #{xnor_scale_binarizer.3} parent=15 // pred_fallthru
        _
    $region16: #{xnor_scale_binarizer.3} parent=5 // pred_fallthru
      _
    %p104 = scmp.le.s32.totalorder 1, %s7
    %p105 = scmp.lt.s32.totalorder %s7, 3
    %p106 = pnand %p104, %p105
    %p107 = pneg %p106
    // Predicated region
    $region21: #{xnor_scale_binarizer.3} parent=5 // pred_check
      _
    $region22: #{xnor_scale_binarizer.3} parent=5 // pred_check_branch
      %109 = sbr.rel (%p106) target = $region24
    $region23: #{xnor_scale_binarizer.3} parent=5 // pred_region
      %s110 = ssub.s32 %s7, 1
      %p111 = scmp.lt.s32.totalorder %s16, 1
      %s112 = scalar_select %p111, %s16, 1
      %p113 = scmp.lt.s32.totalorder %s17, 0
      %s114 = scalar_select %p113, %s17, 0
      %s115 = smul.addr %s114, 2
      %s116 = smul.addr %s112, 2
      %s117 = sadd.s32 %s115, %s116
      %s118 = smul.addr %s117, 4
      %s119 = scalar_lea.vmem %s0, %s118
      %p120 = pneg %p47
      %p121 = pneg %p44
      %p122 = pneg %p73
      %p123 = pneg %p70
      %p124 = scmp.lt.s32.totalorder %s16, 1
      %s125 = scalar_select %p124, %s16, 1
      %s126 = smul.addr %s125, 2
      %s127 = scalar_lea.vmem %s1, %s126
      %p128 = scmp.lt.s32.totalorder %s16, 1
      %s129 = scalar_select %p128, %s16, 1
      %p130 = scmp.lt.s32.totalorder %s17, 0
      %s131 = scalar_select %p130, %s17, 0
      %s132 = smul.addr %s131, 2
      %s133 = smul.addr %s129, 2
      %s134 = sadd.s32 %s132, %s133
      %s135 = smul.addr %s134, 4
      %s136 = scalar_lea.vmem %s0, %s135
      %p137 = scmp.lt.s32.totalorder %s16, 1
      %s138 = scalar_select %p137, %s16, 1
      %s139 = smul.addr %s138, 2
      %s140 = scalar_lea.vmem %s1, %s139
      %p141 = scmp.eq.s32.totalorder %s17, 0
      // Predicated region
      $region25: #{xnor_scale_binarizer.3} parent=23 // pred_check
        %p142 = pneg %p141
      $region26: #{xnor_scale_binarizer.3} parent=23 // pred_check_branch
        %144 = sbr.rel (%p142) target = $region28
      $region27: #{xnor_scale_binarizer.3} parent=23 // pred_region
        %v145 = vlaneseq
        %vm146 = vcmp.ge.s32.totalorder %v145, 0
        %vm147 = vcmp.lt.s32.totalorder %v145, 256
        %vm148 = vmand %vm146, %vm147
        %149 = vst.msk [vmem:[%s140] sm:$0x3] %vm148, 0.0
      $region28: #{xnor_scale_binarizer.3} parent=23 // pred_fallthru
        _
      %v150 = vld [vmem:[%s140] sm:$0x3]
      %v151 = vld [vmem:[%s136] sm:$0xff]
      %153 = vst [vmem:[#allocation1] ss:$2 sm:$0xff] %v151
      %v154 = vld.sshfl [vmem:[#allocation1] sm:$0xff pattern:$0x75316420]
      %v155 = vld.sshfl [vmem:[#allocation1 + $0x8] sm:$0xff pattern:$0x75316420]
      %vm158 = vcmask 1043456
      %v159 = vsel %vm158, %v154, 0.0
      %v160 = vrot.slane %v159, 4
      %v161 = vadd.f32 %v159, %v160
      %v162 = vrot.slane %v161, 2
      %v163 = vadd.f32 %v161, %v162
      %v164 = vrot.slane %v163, 1
      %v165 = vadd.f32 %v163, %v164
      %v166 = vsel %vm158, %v155, 0.0
      %v167 = vrot.slane %v166, 4
      %v168 = vadd.f32 %v166, %v167
      %v169 = vrot.slane %v168, 2
      %v170 = vadd.f32 %v168, %v169
      %v171 = vrot.slane %v170, 1
      %v172 = vadd.f32 %v170, %v171
      %v175 = vrot.slane %v172, 7
      %vm176 = vcmask 1040384
      %v177 = vsel %vm176, %v165, %v175
      %v179 = vadd.f32 %v150, %v177
      %v180 = vlaneseq
      %vm181 = vcmp.ge.s32.totalorder %v180, 0
      %vm182 = vcmp.lt.s32.totalorder %v180, 256
      %vm183 = vmand %vm181, %vm182
      %184 = vst.msk [vmem:[%s140] sm:$0x3] %vm183, %v179
      %p185 = scmp.lt.s32.totalorder %s16, 1
      %s186 = scalar_select %p185, %s16, 1
      %s187 = smul.addr %s186, 2
      %s188 = scalar_lea.vmem %s1, %s187
      // Predicated region
      $region29: #{xnor_scale_binarizer.3} parent=23 // pred_check
        %p189 = pneg %p70
      $region30: #{xnor_scale_binarizer.3} parent=23 // pred_check_branch
        %191 = sbr.rel (%p189) target = $region32
      $region31: #{xnor_scale_binarizer.3} parent=23 // pred_region
        _
      $region32: #{xnor_scale_binarizer.3} parent=23 // pred_fallthru
        _
    $region24: #{xnor_scale_binarizer.3} parent=5 // pred_fallthru
      _
    %p192 = scmp.le.s32.totalorder 2, %s7
    // Predicated region
    $region33: #{xnor_scale_binarizer.3} parent=5 // pred_check
      %p193 = pneg %p192
    $region34: #{xnor_scale_binarizer.3} parent=5 // pred_check_branch
      %195 = sbr.rel (%p193) target = $region36
    $region35: #{xnor_scale_binarizer.3} parent=5 // pred_region
      %s196 = ssub.s32 %s7, 2
      // Predicated region
      $region37: #{xnor_scale_binarizer.3} parent=35 // pred_check
        %p197 = pneg %p76
      $region38: #{xnor_scale_binarizer.3} parent=35 // pred_check_branch
        %199 = sbr.rel (%p197) target = $region40
      $region39: #{xnor_scale_binarizer.3} parent=35 // pred_region
        %p200 = scmp.lt.s32.totalorder %s18, 1
        %s201 = scalar_select %p200, %s18, 1
        %s202 = smul.addr %s201, 2
        %s203 = scalar_lea.vmem %s1, %s202
      $region40: #{xnor_scale_binarizer.3} parent=35 // pred_fallthru
        _
    $region36: #{xnor_scale_binarizer.3} parent=5 // pred_fallthru
      _
  $region6: #{xnor_scale_binarizer.3} parent=0 // loop_footer
    %s11 = sadd.s32 1, %s7
  $region7: #{xnor_scale_binarizer.3} parent=0 // loop_footer_branch
    %6 = sbr.rel target = $region3
  $region8: #{xnor_scale_binarizer.3} parent=0 // loop_exit
    _

// kernel: xnor_scale_binarizer.5
$region0: #{xnor_scale_binarizer.5}
  #allocation0 [shape = 'u32[]', space=smem, size = 0x4, offset = 0x4, fixed_abs, tag = 'smem constant byte address 0x4 - core index']
  #allocation1 [shape = 'u32[72,128]{1,0:T(1,128)}', space=vmem, size = 0x9000, scoped, tag = 'internal scratch']
  %s0 = inlined_call_operand.vmem [shape: f32[2,8,256], index: 0, kind: input, shape index: {}, may-alias: {0,2}]
  %s1 = inlined_call_operand.vmem [shape: f32[2,1,256], index: 1, kind: input, shape index: {}]
  %s2 = inlined_call_operand.vmem [shape: f32[2,8,256], index: 2, kind: output, shape index: {}, may-alias: {0,2}]
  %s3 = sld [smem:[#allocation0]]
  $region41: #{xnor_scale_binarizer.5} parent=0
    _
  %s5 = ssub.s32 1, %s3
  %s6 = scalar_select 0, %s5, %s3
  loop: start=0, step=1, limit=4
  $region2: #{xnor_scale_binarizer.5} parent=0 // loop_pre_header
    _
  $region3: #{xnor_scale_binarizer.5} parent=0 // loop_header
    %s8 = sphi 0, %s12
    %p9 = scmp.ge.s32.totalorder %s8, 4
    %s15 = sphi 0, %s34
    %s16 = sphi 0, %s30
    %s17 = sphi 0, %s26
    %s18 = sphi 0, %s15
    %s19 = sphi 0, %s16
    %s20 = sphi 0, %s17
    %s21 = sphi 0, %s18
    %s22 = sphi 0, %s19
    %s23 = sphi 0, %s20
    %s41 = sphi 0, %s43
    %s44 = sphi 0, %s41
    %s45 = sphi 0, %s44
    %s61 = sphi 0, %s45
    %s69 = sphi 0, %s71
    %s72 = sphi 0, %s69
    %s73 = sphi 0, %s72
    %s89 = sphi 0, %s73
    %s99 = sphi 0, %s101
    %s102 = sphi 0, %s99
    %s103 = sphi 0, %s102
    %s119 = sphi 0, %s103
  $region4: #{xnor_scale_binarizer.5} parent=0 // loop_header_branch
    %11 = sbr.rel (%p9) target = $region8
  $region5: #{xnor_scale_binarizer.5} parent=0 // loop_body
    %s13 = ssub.s32 %s8, 1
    %s14 = ssub.s32 %s8, 2
    %s24 = sadd.s32 1, %s17
    %p25 = scmp.ge.s32.totalorder %s24, 1
    %s26 = scalar_select %p25, 0, %s24
    %s27 = sadd.s32 1, %s16
    %s28 = scalar_select %p25, %s27, %s16
    %p29 = scmp.ge.s32.totalorder %s28, 1
    %s30 = scalar_select %p29, 0, %s28
    %s31 = sadd.s32 1, %s15
    %s32 = scalar_select %p29, %s31, %s15
    %p33 = scmp.ge.s32.totalorder %s32, 2
    %s34 = scalar_select %p33, 0, %s32
    %s35 = ssub.s32 %s15, %s34
    %s36 = ssub.s32 %s16, %s30
    %s37 = sor.u32 %s35, %s36
    %s38 = ssub.s32 %s17, %s26
    %s39 = sor.u32 %s37, %s38
    %p40 = scmp.eq.s32.totalorder %s39, 0
    %s42 = sadd.s32 %s41, 1
    %s43 = scalar_select %p40, %s41, %s42
    %p46 = pneg %p40
    %p47 = scmp.eq.s32.totalorder %s8, 1
    %p48 = por %p46, %p47
    %p49 = scmp.ne.s32.totalorder %s41, %s44
    %p50 = scmp.eq.s32.totalorder %s8, 0
    %p51 = por %p49, %p50
    %p52 = scmp.ne.s32.totalorder %s41, %s44
    %p53 = scmp.eq.s32.totalorder %s13, 1
    %p54 = por %p52, %p53
    %p55 = scmp.ne.s32.totalorder %s44, %s45
    %p56 = scmp.eq.s32.totalorder %s13, 0
    %p57 = por %p55, %p56
    %p58 = scmp.ne.s32.totalorder %s44, %s45
    %p59 = scmp.eq.s32.totalorder %s14, 1
    %p60 = por %p58, %p59
    %p62 = scmp.ne.s32.totalorder %s45, %s61
    %p63 = scmp.eq.s32.totalorder %s14, 0
    %p64 = por %p62, %p63
    %s65 = ssub.s32 %s15, %s34
    %s66 = ssub.s32 %s17, %s26
    %s67 = sor.u32 %s65, %s66
    %p68 = scmp.eq.s32.totalorder %s67, 0
    %s70 = sadd.s32 %s69, 1
    %s71 = scalar_select %p68, %s69, %s70
    %p74 = pneg %p68
    %p75 = scmp.eq.s32.totalorder %s8, 1
    %p76 = por %p74, %p75
    %p77 = scmp.ne.s32.totalorder %s69, %s72
    %p78 = scmp.eq.s32.totalorder %s8, 0
    %p79 = por %p77, %p78
    %p80 = scmp.ne.s32.totalorder %s69, %s72
    %p81 = scmp.eq.s32.totalorder %s13, 1
    %p82 = por %p80, %p81
    %p83 = scmp.ne.s32.totalorder %s72, %s73
    %p84 = scmp.eq.s32.totalorder %s13, 0
    %p85 = por %p83, %p84
    %p86 = scmp.ne.s32.totalorder %s72, %s73
    %p87 = scmp.eq.s32.totalorder %s14, 1
    %p88 = por %p86, %p87
    %p90 = scmp.ne.s32.totalorder %s73, %s89
    %p91 = scmp.eq.s32.totalorder %s14, 0
    %p92 = por %p90, %p91
    %s93 = ssub.s32 %s15, %s34
    %s94 = ssub.s32 %s16, %s30
    %s95 = sor.u32 %s93, %s94
    %s96 = ssub.s32 %s17, %s26
    %s97 = sor.u32 %s95, %s96
    %p98 = scmp.eq.s32.totalorder %s97, 0
    %s100 = sadd.s32 %s99, 1
    %s101 = scalar_select %p98, %s99, %s100
    %p104 = pneg %p98
    %p105 = scmp.eq.s32.totalorder %s8, 1
    %p106 = por %p104, %p105
    %p107 = scmp.ne.s32.totalorder %s99, %s102
    %p108 = scmp.eq.s32.totalorder %s8, 0
    %p109 = por %p107, %p108
    %p110 = scmp.ne.s32.totalorder %s99, %s102
    %p111 = scmp.eq.s32.totalorder %s13, 1
    %p112 = por %p110, %p111
    %p113 = scmp.ne.s32.totalorder %s102, %s103
    %p114 = scmp.eq.s32.totalorder %s13, 0
    %p115 = por %p113, %p114
    %p116 = scmp.ne.s32.totalorder %s102, %s103
    %p117 = scmp.eq.s32.totalorder %s14, 1
    %p118 = por %p116, %p117
    %p120 = scmp.ne.s32.totalorder %s103, %s119
    %p121 = scmp.eq.s32.totalorder %s14, 0
    %p122 = por %p120, %p121
    %p123 = scmp.le.s32.totalorder 1, %s8
    %p124 = scmp.lt.s32.totalorder %s8, 3
    %p125 = pnand %p123, %p124
    %p126 = pneg %p125
    // Predicated region
    $region9: #{xnor_scale_binarizer.5} parent=5 // pred_check
      _
    $region10: #{xnor_scale_binarizer.5} parent=5 // pred_check_branch
      %128 = sbr.rel (%p125) target = $region12
    $region11: #{xnor_scale_binarizer.5} parent=5 // pred_region
      %s129 = ssub.s32 %s8, 1
    $region12: #{xnor_scale_binarizer.5} parent=5 // pred_fallthru
      _
    %p130 = scmp.lt.s32.totalorder %s8, 2
    // Predicated region
    $region13: #{xnor_scale_binarizer.5} parent=5 // pred_check
      %p131 = pneg %p130
    $region14: #{xnor_scale_binarizer.5} parent=5 // pred_check_branch
      %133 = sbr.rel (%p131) target = $region16
    $region15: #{xnor_scale_binarizer.5} parent=5 // pred_region
      // Predicated region
      $region17: #{xnor_scale_binarizer.5} parent=15 // pred_check
        %p134 = pneg %p51
      $region18: #{xnor_scale_binarizer.5} parent=15 // pred_check_branch
        %136 = sbr.rel (%p134) target = $region20
      $region19: #{xnor_scale_binarizer.5} parent=15 // pred_region
        %s137 = smul.u32 2, %s17
        %p138 = scmp.lt.s32.totalorder %s15, 1
        %s139 = scalar_select %p138, %s15, 1
        %p140 = scmp.lt.s32.totalorder %s16, 0
        %s141 = scalar_select %p140, %s16, 0
        %p142 = scmp.lt.s32.totalorder %s137, 1
        %s143 = scalar_select %p142, %s137, 1
        %s144 = smul.addr %s141, 2
        %s145 = sadd.s32 %s143, %s144
        %s146 = smul.addr %s139, 2
        %s147 = sadd.s32 %s145, %s146
        %s148 = smul.addr %s147, 8
        %s149 = scalar_lea.vmem %s0, %s148
        %s150 = smul.u32 2, %s17
      $region20: #{xnor_scale_binarizer.5} parent=15 // pred_fallthru
        _
      // Predicated region
      $region21: #{xnor_scale_binarizer.5} parent=15 // pred_check
        %p151 = pneg %p79
      $region22: #{xnor_scale_binarizer.5} parent=15 // pred_check_branch
        %153 = sbr.rel (%p151) target = $region24
      $region23: #{xnor_scale_binarizer.5} parent=15 // pred_region
        %s154 = smul.u32 2, %s17
        %p155 = scmp.lt.s32.totalorder %s15, 1
        %s156 = scalar_select %p155, %s15, 1
        %p157 = scmp.lt.s32.totalorder %s154, 1
        %s158 = scalar_select %p157, %s154, 1
        %s159 = smul.addr %s156, 2
        %s160 = sadd.s32 %s158, %s159
        %s161 = scalar_lea.vmem %s1, %s160
        %s162 = smul.u32 2, %s17
      $region24: #{xnor_scale_binarizer.5} parent=15 // pred_fallthru
        _
    $region16: #{xnor_scale_binarizer.5} parent=5 // pred_fallthru
      _
    %p163 = scmp.le.s32.totalorder 1, %s8
    %p164 = scmp.lt.s32.totalorder %s8, 3
    %p165 = pnand %p163, %p164
    %p166 = pneg %p165
    // Predicated region
    $region25: #{xnor_scale_binarizer.5} parent=5 // pred_check
      _
    $region26: #{xnor_scale_binarizer.5} parent=5 // pred_check_branch
      %168 = sbr.rel (%p165) target = $region28
    $region27: #{xnor_scale_binarizer.5} parent=5 // pred_region
      %s169 = ssub.s32 %s8, 1
      %s170 = smul.u32 2, %s20
      %p171 = scmp.lt.s32.totalorder %s18, 1
      %s172 = scalar_select %p171, %s18, 1
      %p173 = scmp.lt.s32.totalorder %s19, 0
      %s174 = scalar_select %p173, %s19, 0
      %p175 = scmp.lt.s32.totalorder %s170, 1
      %s176 = scalar_select %p175, %s170, 1
      %s177 = smul.addr %s174, 2
      %s178 = sadd.s32 %s176, %s177
      %s179 = smul.addr %s172, 2
      %s180 = sadd.s32 %s178, %s179
      %s181 = smul.addr %s180, 8
      %s182 = scalar_lea.vmem %s0, %s181
      %p183 = pneg %p57
      %p184 = pneg %p54
      %s185 = smul.u32 2, %s20
      %p186 = scmp.lt.s32.totalorder %s18, 1
      %s187 = scalar_select %p186, %s18, 1
      %p188 = scmp.lt.s32.totalorder %s185, 1
      %s189 = scalar_select %p188, %s185, 1
      %s190 = smul.addr %s187, 2
      %s191 = sadd.s32 %s189, %s190
      %s192 = scalar_lea.vmem %s1, %s191
      %p193 = pneg %p85
      %p194 = pneg %p82
      %p195 = pneg %p115
      %p196 = pneg %p112
      %s197 = smul.u32 2, %s20
      %p198 = scmp.lt.s32.totalorder %s18, 1
      %s199 = scalar_select %p198, %s18, 1
      %p200 = scmp.lt.s32.totalorder %s19, 0
      %s201 = scalar_select %p200, %s19, 0
      %p202 = scmp.lt.s32.totalorder %s197, 1
      %s203 = scalar_select %p202, %s197, 1
      %s204 = smul.addr %s201, 2
      %s205 = sadd.s32 %s203, %s204
      %s206 = smul.addr %s199, 2
      %s207 = sadd.s32 %s205, %s206
      %s208 = smul.addr %s207, 8
      %s209 = scalar_lea.vmem %s2, %s208
      %s210 = smul.u32 2, %s20
      %p211 = scmp.lt.s32.totalorder %s18, 1
      %s212 = scalar_select %p211, %s18, 1
      %p213 = scmp.lt.s32.totalorder %s19, 0
      %s214 = scalar_select %p213, %s19, 0
      %p215 = scmp.lt.s32.totalorder %s210, 1
      %s216 = scalar_select %p215, %s210, 1
      %s217 = smul.addr %s214, 2
      %s218 = sadd.s32 %s216, %s217
      %s219 = smul.addr %s212, 2
      %s220 = sadd.s32 %s218, %s219
      %s221 = smul.addr %s220, 8
      %s222 = scalar_lea.vmem %s0, %s221
      %s223 = smul.u32 2, %s20
      %s224 = smul.u32 2, %s20
      %p225 = scmp.lt.s32.totalorder %s18, 1
      %s226 = scalar_select %p225, %s18, 1
      %p227 = scmp.lt.s32.totalorder %s224, 1
      %s228 = scalar_select %p227, %s224, 1
      %s229 = smul.addr %s226, 2
      %s230 = sadd.s32 %s228, %s229
      %s231 = scalar_lea.vmem %s1, %s230
      %s232 = smul.u32 2, %s20
      %s233 = smul.u32 2, %s20
      %p234 = scmp.lt.s32.totalorder %s18, 1
      %s235 = scalar_select %p234, %s18, 1
      %p236 = scmp.lt.s32.totalorder %s19, 0
      %s237 = scalar_select %p236, %s19, 0
      %p238 = scmp.lt.s32.totalorder %s233, 1
      %s239 = scalar_select %p238, %s233, 1
      %s240 = smul.addr %s237, 2
      %s241 = sadd.s32 %s239, %s240
      %s242 = smul.addr %s235, 2
      %s243 = sadd.s32 %s241, %s242
      %s244 = smul.addr %s243, 8
      %s245 = scalar_lea.vmem %s2, %s244
      %s246 = smul.u32 2, %s20
      %v247 = vld [vmem:[%s222] sm:$0xff]
      %v248 = vld [vmem:[%s222 + $0x8] sm:$0xff]
      %v249 = vld [vmem:[%s231] sm:$0x3]
      %v251 = vperm.slane %v249, 0
      %v252 = vperm.slane %v249, 1
      %v255 = vmul.f32 %v247, %v251
      %v256 = vmul.f32 %v248, %v252
      %257 = vst [vmem:[%s245] sm:$0xff] %v255
      %258 = vst [vmem:[%s245 + $0x8] sm:$0xff] %v256
      %s259 = smul.u32 2, %s20
      %p260 = scmp.lt.s32.totalorder %s18, 1
      %s261 = scalar_select %p260, %s18, 1
      %p262 = scmp.lt.s32.totalorder %s19, 0
      %s263 = scalar_select %p262, %s19, 0
      %p264 = scmp.lt.s32.totalorder %s259, 1
      %s265 = scalar_select %p264, %s259, 1
      %s266 = smul.addr %s263, 2
      %s267 = sadd.s32 %s265, %s266
      %s268 = smul.addr %s261, 2
      %s269 = sadd.s32 %s267, %s268
      %s270 = smul.addr %s269, 8
      %s271 = scalar_lea.vmem %s2, %s270
      // Predicated region
      $region29: #{xnor_scale_binarizer.5} parent=27 // pred_check
        %p272 = pneg %p112
      $region30: #{xnor_scale_binarizer.5} parent=27 // pred_check_branch
        %274 = sbr.rel (%p272) target = $region32
      $region31: #{xnor_scale_binarizer.5} parent=27 // pred_region
        %s275 = smul.u32 2, %s20
      $region32: #{xnor_scale_binarizer.5} parent=27 // pred_fallthru
        _
    $region28: #{xnor_scale_binarizer.5} parent=5 // pred_fallthru
      _
    %p276 = scmp.le.s32.totalorder 2, %s8
    // Predicated region
    $region33: #{xnor_scale_binarizer.5} parent=5 // pred_check
      %p277 = pneg %p276
    $region34: #{xnor_scale_binarizer.5} parent=5 // pred_check_branch
      %279 = sbr.rel (%p277) target = $region36
    $region35: #{xnor_scale_binarizer.5} parent=5 // pred_region
      %s280 = ssub.s32 %s8, 2
      // Predicated region
      $region37: #{xnor_scale_binarizer.5} parent=35 // pred_check
        %p281 = pneg %p118
      $region38: #{xnor_scale_binarizer.5} parent=35 // pred_check_branch
        %283 = sbr.rel (%p281) target = $region40
      $region39: #{xnor_scale_binarizer.5} parent=35 // pred_region
        %s284 = smul.u32 2, %s23
        %p285 = scmp.lt.s32.totalorder %s21, 1
        %s286 = scalar_select %p285, %s21, 1
        %p287 = scmp.lt.s32.totalorder %s22, 0
        %s288 = scalar_select %p287, %s22, 0
        %p289 = scmp.lt.s32.totalorder %s284, 1
        %s290 = scalar_select %p289, %s284, 1
        %s291 = smul.addr %s288, 2
        %s292 = sadd.s32 %s290, %s291
        %s293 = smul.addr %s286, 2
        %s294 = sadd.s32 %s292, %s293
        %s295 = smul.addr %s294, 8
        %s296 = scalar_lea.vmem %s2, %s295
      $region40: #{xnor_scale_binarizer.5} parent=35 // pred_fallthru
        _
    $region36: #{xnor_scale_binarizer.5} parent=5 // pred_fallthru
      _
  $region6: #{xnor_scale_binarizer.5} parent=0 // loop_footer
    %s12 = sadd.s32 1, %s8
  $region7: #{xnor_scale_binarizer.5} parent=0 // loop_footer_branch
    %7 = sbr.rel target = $region3
  $region8: #{xnor_scale_binarizer.5} parent=0 // loop_exit
    _

</llo_original>
